<compile_context>
chip_gen: v5e
topology: v5e:2x2
jax: 0.10.0
libtpu: 0.0.40
codegen_flags: <defaults>
</compile_context>

<pallas_src>
import functools
import math

import jax
import jax.numpy as jnp
from jax.experimental import pallas as pl
from jax.experimental.pallas import tpu as pltpu


def _meta_attention_kernel(q_ref, v_ref, wflat_ref, wq_ref, bq_ref, ws_ref, bs_ref,
                           out_ref, k_scr, w_scr, *, n_inputs, max_len, d_att, bb):
    """One batch block (bb batch elements) per grid step; everything fused."""
    L, Da, n = max_len, d_att, n_inputs
    Dm = q_ref.shape[-1]
    scale = 1.0 / math.sqrt(Da)

    # ---- q_net over all bb*L query rows in a single MXU call ------------------
    Q = jnp.dot(q_ref[...], wq_ref[...],
                preferred_element_type=jnp.float32) + bq_ref[...]       # (bb*L, Da)
    Q3 = Q.reshape(bb, L, Da)                   # leading-dim split: layout no-op

    # ---- s_net over all bb*n attention-weight maps in a single MXU call -------
    wf = wflat_ref[0]                           # (bb*n, L*L) -- single copy of W maps
    S = jnp.dot(wf, ws_ref[...],
                preferred_element_type=jnp.float32) + bs_ref[...]       # (bb*n, L*Da)

    # ---- in-kernel lane->sublane relayouts via scratch -------------------------
    #   S[(b,i),  j*Da + d] -> K[(b,i), j, d]   (keys for the scores matmul)
    #   wf[(b,i), l*L  + j] -> W[(b,i), l, j]   (maps for the final weighted sum)
    # L tiny static-slice stores (always supported), then layout-no-op regroups.
    for j in range(L):
        k_scr[:, j, :] = S[:, j * Da:(j + 1) * Da]
        w_scr[:, j, :] = wf[:, j * L:(j + 1) * L]
    K = k_scr[...].reshape(bb, n * L, Da)                               # (bb, n*L, Da)
    w4 = w_scr[...].reshape(bb, n, L, L)                                # (bb, n, L, L)

    # ---- scores + softmax over the full key axis (n_inputs * L keys) -----------
    scores = jnp.einsum("bld,bkd->blk", Q3, K,
                        preferred_element_type=jnp.float32) * scale     # (bb, L, n*L)
    m1 = jnp.max(scores, axis=-1, keepdims=True)
    e1 = jnp.exp(scores - m1)
    inv1 = pl.reciprocal(jnp.sum(e1, axis=-1, keepdims=True))           # hoisted, exact
    attn = e1 * inv1                                                    # (bb, L, n*L)

    # ---- second softmax across the n_inputs axis (torch: chunk/stack/softmax) --
    # Logits are probabilities in [0, 1]; exp is overflow-safe without a max shift.
    e2 = [jnp.exp(attn[:, :, i * L:(i + 1) * L]) for i in range(n)]     # each (bb, L, L)
    inv2 = pl.reciprocal(functools.reduce(lambda a, b: a + b, e2))      # hoisted, exact

    # ---- weighted sum of the incoming maps; normalise once at the end ----------
    w_final = functools.reduce(
        lambda a, b: a + b, [w4[:, i] * e2[i] for i in range(n)]) * inv2  # (bb, L, L)

    # ---- output = attention_weights @ v  (original v, per the torch module) ----
    v3 = v_ref[...].reshape(bb, L, Dm)          # leading-dim split: layout no-op
    out = jnp.einsum("blm,bmd->bld", w_final, v3,
                     preferred_element_type=jnp.float32)                # (bb, L, Dm)
    out_ref[...] = out.reshape(bb * L, Dm).astype(out_ref.dtype)


def full_context_meta_attention(q, v, attn_weights_list, params, *, num_blocks=None):
    B, L, Dm = q.shape
    n = len(attn_weights_list)
    Da = params["wq"].shape[1]
    LL = L * L

    if num_blocks is None:
        # >=2 parallel blocks keep both v7x TensorCores busy; capping at 2 keeps the
        # fixed per-grid-step overhead negligible on single-TC v5e / v6e.
        num_blocks = 2 if (B >= 2 and B % 2 == 0) else 1
    assert B % num_blocks == 0
    bb = B // num_blocks

    # Host-side (free) reshapes so all in-kernel matmuls are plain batched 2-D and
    # the W maps are passed exactly once, in their lane-dense flat layout.
    q2 = q.reshape(B * L, Dm)
    v2 = v.reshape(B * L, Dm)
    w_flat = jnp.stack(attn_weights_list, axis=1).reshape(B * n, LL)     # rows = (b, i)
    w_flat = w_flat.reshape(num_blocks, bb * n, LL)

    kernel = functools.partial(_meta_attention_kernel,
                               n_inputs=n, max_len=L, d_att=Da, bb=bb)

    out2 = pl.pallas_call(
        kernel,
        out_shape=jax.ShapeDtypeStruct((B * L, Dm), q.dtype),
        grid=(num_blocks,),
        in_specs=[
            pl.BlockSpec((bb * L, Dm), lambda g: (g, 0)),       # q rows
            pl.BlockSpec((bb * L, Dm), lambda g: (g, 0)),       # v rows
            pl.BlockSpec((1, bb * n, LL), lambda g: (g, 0, 0)), # flattened W maps (single copy)
            pl.BlockSpec((Dm, Da), lambda g: (0, 0)),           # Wq  (stored as (in, out))
            pl.BlockSpec((1, Da), lambda g: (0, 0)),            # bq
            pl.BlockSpec((LL, L * Da), lambda g: (0, 0)),       # Ws  (stored as (in, out))
            pl.BlockSpec((1, L * Da), lambda g: (0, 0)),        # bs
        ],
        out_specs=pl.BlockSpec((bb * L, Dm), lambda g: (g, 0)),
        scratch_shapes=[
            pltpu.VMEM((bb * n, L, Da), jnp.float32),           # K relayout buffer
            pltpu.VMEM((bb * n, L, L), jnp.float32),            # W-map relayout buffer
        ],
        compiler_params=pltpu.CompilerParams(dimension_semantics=("parallel",)),
    )(q2, v2, w_flat, params["wq"], params["bq"], params["ws"], params["bs"])

    return out2.reshape(B, L, Dm)


def reference(q, v, attn_weights_list, params):
    """Pure-JAX mirror of the torch forward pass (HIGHEST precision oracle)."""
    B, L, Dm = q.shape
    n = len(attn_weights_list)
    Da = params["wq"].shape[1]
    hp = jax.lax.Precision.HIGHEST
    Q = jnp.dot(q, params["wq"], precision=hp) + params["bq"]
    ks = []
    for w in attn_weights_list:
        s = jnp.dot(w.reshape(B, L * L), params["ws"], precision=hp) + params["bs"]
        ks.append(s.reshape(B, L, Da))
    K = jnp.concatenate(ks, axis=-2)                              # (B, n*L, Da)
    scores = jnp.einsum("bld,bkd->blk", Q, K, precision=hp) / math.sqrt(Da)
    A = jax.nn.softmax(scores, axis=-1)                           # (B, L, n*L)
    chunks = jnp.stack([A[..., i * L:(i + 1) * L] for i in range(n)], axis=-3)
    P = jax.nn.softmax(chunks, axis=-3)
    Wst = jnp.stack(attn_weights_list, axis=-3)
    Wfin = (Wst * P).sum(axis=-3)
    return jnp.einsum("blm,bmd->bld", Wfin, v, precision=hp)


def _linear_params(key, fan_in, fan_out):
    """torch.nn.Linear default init, weight stored transposed as (in, out)."""
    kw, kb = jax.random.split(key)
    bound = 1.0 / math.sqrt(fan_in)
    w = jax.random.uniform(kw, (fan_in, fan_out), jnp.float32, -bound, bound)
    b = jax.random.uniform(kb, (1, fan_out), jnp.float32, -bound, bound)
    return w, b


if __name__ == "__main__":
    # module config: max_len=8, d_model=32, d_att=32, n_inputs=2, n_heads=4, dropout=0
    B, L, Dm, Da, N_IN = 4, 8, 32, 32, 2

    key = jax.random.PRNGKey(0)
    keys = jax.random.split(key, 4 + N_IN)

    q = jax.random.normal(keys[0], (B, L, Dm), jnp.float32)
    v = jax.random.normal(keys[1], (B, L, Dm), jnp.float32)
    attn_w = [jax.nn.softmax(jax.random.normal(keys[4 + i], (B, L, L), jnp.float32), axis=-1)
              for i in range(N_IN)]

    wq, bq = _linear_params(keys[2], Dm, Da)          # q_net
    ws, bs = _linear_params(keys[3], L * L, L * Da)   # s_net
    # v_net / mha params exist in the module but their outputs are unused here.
    params = dict(wq=wq, bq=bq, ws=ws, bs=bs)

    out = jax.block_until_ready(full_context_meta_attention(q, v, attn_w, params))
    ref = reference(q, v, attn_w, params)

    assert out.shape == (B, L, Dm) and out.dtype == jnp.float32
    # Tolerance accounts for default MXU matmul precision (bf16-level input rounding)
    # in the kernel vs. the HIGHEST-precision reference; real bugs produce O(0.1+) errors.
    max_err = float(jnp.max(jnp.abs(out - ref)))
    assert jnp.allclose(out, ref, atol=3e-3, rtol=3e-3), max_err

    print("KERNEL_OK")
</pallas_src>

<mosaic_0001>
module attributes {stable_mosaic.version = 11 : i64} {
  func.func @_meta_attention_kernel(%arg0: i32, %arg1: memref<16x32xf32, #tpu.memory_space<vmem>>, %arg2: memref<16x32xf32, #tpu.memory_space<vmem>>, %arg3: memref<1x4x64xf32, #tpu.memory_space<vmem>>, %arg4: memref<32x32xf32, #tpu.memory_space<vmem>>, %arg5: memref<1x32xf32, #tpu.memory_space<vmem>>, %arg6: memref<64x256xf32, #tpu.memory_space<vmem>>, %arg7: memref<1x256xf32, #tpu.memory_space<vmem>>, %arg8: memref<16x32xf32, #tpu.memory_space<vmem>>, %arg9: memref<4x8x32xf32, #tpu.memory_space<vmem>>, %arg10: memref<4x8x8xf32, #tpu.memory_space<vmem>>) attributes {dimension_semantics = [#tpu.dimension_semantics<parallel>], iteration_bounds = array<i64: 2>, scalar_prefetch = 0 : i64, scratch_operands = 2 : i64, tpu.core_type = #tpu.core_type<tc>, window_params = [{transform_indices = @transform_0, window_bounds = array<i64: 16, 32>}, {transform_indices = @transform_1, window_bounds = array<i64: 16, 32>}, {transform_indices = @transform_2, window_bounds = array<i64: 1, 4, 64>}, {pipeline_mode = #tpu.pipeline_mode<synchronous>, transform_indices = @transform_3, window_bounds = array<i64: 32, 32>}, {pipeline_mode = #tpu.pipeline_mode<synchronous>, transform_indices = @transform_4, window_bounds = array<i64: 1, 32>}, {pipeline_mode = #tpu.pipeline_mode<synchronous>, transform_indices = @transform_5, window_bounds = array<i64: 64, 256>}, {pipeline_mode = #tpu.pipeline_mode<synchronous>, transform_indices = @transform_6, window_bounds = array<i64: 1, 256>}, {transform_indices = @transform_7, window_bounds = array<i64: 16, 32>}]} {
    %c0 = arith.constant 0 : index
    %c0_0 = arith.constant 0 : index
    %0 = vector.load %arg1[%c0, %c0_0] : memref<16x32xf32, #tpu.memory_space<vmem>>, vector<16x32xf32>
    %c0_1 = arith.constant 0 : index
    %c0_2 = arith.constant 0 : index
    %1 = vector.load %arg4[%c0_1, %c0_2] : memref<32x32xf32, #tpu.memory_space<vmem>>, vector<32x32xf32>
    %cst = arith.constant dense<0.000000e+00> : vector<16x32xf32>
    %2 = tpu.matmul %0, %1, %cst {dimension_numbers = #tpu.dot_dimension_numbers<[1], [0], [0], [1], [0, 0, 1, 1], [], []>} : vector<16x32xf32>, vector<32x32xf32>, vector<16x32xf32> -> vector<16x32xf32>
    %c0_3 = arith.constant 0 : index
    %c0_4 = arith.constant 0 : index
    %3 = vector.load %arg5[%c0_3, %c0_4] : memref<1x32xf32, #tpu.memory_space<vmem>>, vector<1x32xf32>
    %4 = vector.broadcast %3 : vector<1x32xf32> to vector<16x32xf32>
    %5 = arith.addf %2, %4 : vector<16x32xf32>
    %6 = vector.shape_cast %5 : vector<16x32xf32> to vector<2x8x32xf32>
    %c0_5 = arith.constant 0 : index
    %c0_6 = arith.constant 0 : index
    %c0_7 = arith.constant 0 : index
    %7 = vector.load %arg3[%c0_5, %c0_6, %c0_7] : memref<1x4x64xf32, #tpu.memory_space<vmem>>, vector<1x4x64xf32>
    %8 = vector.shape_cast %7 : vector<1x4x64xf32> to vector<4x64xf32>
    %c0_8 = arith.constant 0 : index
    %c0_9 = arith.constant 0 : index
    %9 = vector.load %arg6[%c0_8, %c0_9] : memref<64x256xf32, #tpu.memory_space<vmem>>, vector<64x256xf32>
    %cst_10 = arith.constant dense<0.000000e+00> : vector<4x256xf32>
    %10 = tpu.matmul %8, %9, %cst_10 {dimension_numbers = #tpu.dot_dimension_numbers<[1], [0], [0], [1], [0, 0, 1, 1], [], []>} : vector<4x64xf32>, vector<64x256xf32>, vector<4x256xf32> -> vector<4x256xf32>
    %c0_11 = arith.constant 0 : index
    %c0_12 = arith.constant 0 : index
    %11 = vector.load %arg7[%c0_11, %c0_12] : memref<1x256xf32, #tpu.memory_space<vmem>>, vector<1x256xf32>
    %12 = vector.broadcast %11 : vector<1x256xf32> to vector<4x256xf32>
    %13 = arith.addf %10, %12 : vector<4x256xf32>
    %14 = vector.extract_strided_slice %13 {offsets = [0, 0], sizes = [4, 32], strides = [1, 1]} : vector<4x256xf32> to vector<4x32xf32>
    %c0_13 = arith.constant 0 : index
    %c0_14 = arith.constant 0 : index
    %c0_15 = arith.constant 0 : index
    %15 = vector.load %arg9[%c0_13, %c0_14, %c0_15] : memref<4x8x32xf32, #tpu.memory_space<vmem>>, vector<4x1x32xf32>
    %16 = vector.shape_cast %15 : vector<4x1x32xf32> to vector<4x32xf32>
    %17 = vector.shape_cast %14 : vector<4x32xf32> to vector<4x1x32xf32>
    tpu.vector_store %arg9[%c0_13, %c0_14, %c0_15], %17 {strides = array<i32>} : memref<4x8x32xf32, #tpu.memory_space<vmem>>, vector<4x1x32xf32>,
    %18 = vector.extract_strided_slice %8 {offsets = [0, 0], sizes = [4, 8], strides = [1, 1]} : vector<4x64xf32> to vector<4x8xf32>
    %c0_16 = arith.constant 0 : index
    %c0_17 = arith.constant 0 : index
    %c0_18 = arith.constant 0 : index
    %19 = vector.load %arg10[%c0_16, %c0_17, %c0_18] : memref<4x8x8xf32, #tpu.memory_space<vmem>>, vector<4x1x8xf32>
    %20 = vector.shape_cast %19 : vector<4x1x8xf32> to vector<4x8xf32>
    %21 = vector.shape_cast %18 : vector<4x8xf32> to vector<4x1x8xf32>
    tpu.vector_store %arg10[%c0_16, %c0_17, %c0_18], %21 {strides = array<i32>} : memref<4x8x8xf32, #tpu.memory_space<vmem>>, vector<4x1x8xf32>,
    %22 = vector.extract_strided_slice %13 {offsets = [0, 32], sizes = [4, 32], strides = [1, 1]} : vector<4x256xf32> to vector<4x32xf32>
    %c0_19 = arith.constant 0 : index
    %c1 = arith.constant 1 : index
    %c0_20 = arith.constant 0 : index
    %23 = vector.load %arg9[%c0_19, %c1, %c0_20] : memref<4x8x32xf32, #tpu.memory_space<vmem>>, vector<4x1x32xf32>
    %24 = vector.shape_cast %23 : vector<4x1x32xf32> to vector<4x32xf32>
    %25 = vector.shape_cast %22 : vector<4x32xf32> to vector<4x1x32xf32>
    tpu.vector_store %arg9[%c0_19, %c1, %c0_20], %25 {strides = array<i32>} : memref<4x8x32xf32, #tpu.memory_space<vmem>>, vector<4x1x32xf32>,
    %26 = vector.extract_strided_slice %8 {offsets = [0, 8], sizes = [4, 8], strides = [1, 1]} : vector<4x64xf32> to vector<4x8xf32>
    %c0_21 = arith.constant 0 : index
    %c1_22 = arith.constant 1 : index
    %c0_23 = arith.constant 0 : index
    %27 = vector.load %arg10[%c0_21, %c1_22, %c0_23] : memref<4x8x8xf32, #tpu.memory_space<vmem>>, vector<4x1x8xf32>
    %28 = vector.shape_cast %27 : vector<4x1x8xf32> to vector<4x8xf32>
    %29 = vector.shape_cast %26 : vector<4x8xf32> to vector<4x1x8xf32>
    tpu.vector_store %arg10[%c0_21, %c1_22, %c0_23], %29 {strides = array<i32>} : memref<4x8x8xf32, #tpu.memory_space<vmem>>, vector<4x1x8xf32>,
    %30 = vector.extract_strided_slice %13 {offsets = [0, 64], sizes = [4, 32], strides = [1, 1]} : vector<4x256xf32> to vector<4x32xf32>
    %c0_24 = arith.constant 0 : index
    %c2 = arith.constant 2 : index
    %c0_25 = arith.constant 0 : index
    %31 = vector.load %arg9[%c0_24, %c2, %c0_25] : memref<4x8x32xf32, #tpu.memory_space<vmem>>, vector<4x1x32xf32>
    %32 = vector.shape_cast %31 : vector<4x1x32xf32> to vector<4x32xf32>
    %33 = vector.shape_cast %30 : vector<4x32xf32> to vector<4x1x32xf32>
    tpu.vector_store %arg9[%c0_24, %c2, %c0_25], %33 {strides = array<i32>} : memref<4x8x32xf32, #tpu.memory_space<vmem>>, vector<4x1x32xf32>,
    %34 = vector.extract_strided_slice %8 {offsets = [0, 16], sizes = [4, 8], strides = [1, 1]} : vector<4x64xf32> to vector<4x8xf32>
    %c0_26 = arith.constant 0 : index
    %c2_27 = arith.constant 2 : index
    %c0_28 = arith.constant 0 : index
    %35 = vector.load %arg10[%c0_26, %c2_27, %c0_28] : memref<4x8x8xf32, #tpu.memory_space<vmem>>, vector<4x1x8xf32>
    %36 = vector.shape_cast %35 : vector<4x1x8xf32> to vector<4x8xf32>
    %37 = vector.shape_cast %34 : vector<4x8xf32> to vector<4x1x8xf32>
    tpu.vector_store %arg10[%c0_26, %c2_27, %c0_28], %37 {strides = array<i32>} : memref<4x8x8xf32, #tpu.memory_space<vmem>>, vector<4x1x8xf32>,
    %38 = vector.extract_strided_slice %13 {offsets = [0, 96], sizes = [4, 32], strides = [1, 1]} : vector<4x256xf32> to vector<4x32xf32>
    %c0_29 = arith.constant 0 : index
    %c3 = arith.constant 3 : index
    %c0_30 = arith.constant 0 : index
    %39 = vector.load %arg9[%c0_29, %c3, %c0_30] : memref<4x8x32xf32, #tpu.memory_space<vmem>>, vector<4x1x32xf32>
    %40 = vector.shape_cast %39 : vector<4x1x32xf32> to vector<4x32xf32>
    %41 = vector.shape_cast %38 : vector<4x32xf32> to vector<4x1x32xf32>
    tpu.vector_store %arg9[%c0_29, %c3, %c0_30], %41 {strides = array<i32>} : memref<4x8x32xf32, #tpu.memory_space<vmem>>, vector<4x1x32xf32>,
    %42 = vector.extract_strided_slice %8 {offsets = [0, 24], sizes = [4, 8], strides = [1, 1]} : vector<4x64xf32> to vector<4x8xf32>
    %c0_31 = arith.constant 0 : index
    %c3_32 = arith.constant 3 : index
    %c0_33 = arith.constant 0 : index
    %43 = vector.load %arg10[%c0_31, %c3_32, %c0_33] : memref<4x8x8xf32, #tpu.memory_space<vmem>>, vector<4x1x8xf32>
    %44 = vector.shape_cast %43 : vector<4x1x8xf32> to vector<4x8xf32>
    %45 = vector.shape_cast %42 : vector<4x8xf32> to vector<4x1x8xf32>
    tpu.vector_store %arg10[%c0_31, %c3_32, %c0_33], %45 {strides = array<i32>} : memref<4x8x8xf32, #tpu.memory_space<vmem>>, vector<4x1x8xf32>,
    %46 = vector.extract_strided_slice %13 {offsets = [0, 128], sizes = [4, 32], strides = [1, 1]} : vector<4x256xf32> to vector<4x32xf32>
    %c0_34 = arith.constant 0 : index
    %c4 = arith.constant 4 : index
    %c0_35 = arith.constant 0 : index
    %47 = vector.load %arg9[%c0_34, %c4, %c0_35] : memref<4x8x32xf32, #tpu.memory_space<vmem>>, vector<4x1x32xf32>
    %48 = vector.shape_cast %47 : vector<4x1x32xf32> to vector<4x32xf32>
    %49 = vector.shape_cast %46 : vector<4x32xf32> to vector<4x1x32xf32>
    tpu.vector_store %arg9[%c0_34, %c4, %c0_35], %49 {strides = array<i32>} : memref<4x8x32xf32, #tpu.memory_space<vmem>>, vector<4x1x32xf32>,
    %50 = vector.extract_strided_slice %8 {offsets = [0, 32], sizes = [4, 8], strides = [1, 1]} : vector<4x64xf32> to vector<4x8xf32>
    %c0_36 = arith.constant 0 : index
    %c4_37 = arith.constant 4 : index
    %c0_38 = arith.constant 0 : index
    %51 = vector.load %arg10[%c0_36, %c4_37, %c0_38] : memref<4x8x8xf32, #tpu.memory_space<vmem>>, vector<4x1x8xf32>
    %52 = vector.shape_cast %51 : vector<4x1x8xf32> to vector<4x8xf32>
    %53 = vector.shape_cast %50 : vector<4x8xf32> to vector<4x1x8xf32>
    tpu.vector_store %arg10[%c0_36, %c4_37, %c0_38], %53 {strides = array<i32>} : memref<4x8x8xf32, #tpu.memory_space<vmem>>, vector<4x1x8xf32>,
    %54 = vector.extract_strided_slice %13 {offsets = [0, 160], sizes = [4, 32], strides = [1, 1]} : vector<4x256xf32> to vector<4x32xf32>
    %c0_39 = arith.constant 0 : index
    %c5 = arith.constant 5 : index
    %c0_40 = arith.constant 0 : index
    %55 = vector.load %arg9[%c0_39, %c5, %c0_40] : memref<4x8x32xf32, #tpu.memory_space<vmem>>, vector<4x1x32xf32>
    %56 = vector.shape_cast %55 : vector<4x1x32xf32> to vector<4x32xf32>
    %57 = vector.shape_cast %54 : vector<4x32xf32> to vector<4x1x32xf32>
    tpu.vector_store %arg9[%c0_39, %c5, %c0_40], %57 {strides = array<i32>} : memref<4x8x32xf32, #tpu.memory_space<vmem>>, vector<4x1x32xf32>,
    %58 = vector.extract_strided_slice %8 {offsets = [0, 40], sizes = [4, 8], strides = [1, 1]} : vector<4x64xf32> to vector<4x8xf32>
    %c0_41 = arith.constant 0 : index
    %c5_42 = arith.constant 5 : index
    %c0_43 = arith.constant 0 : index
    %59 = vector.load %arg10[%c0_41, %c5_42, %c0_43] : memref<4x8x8xf32, #tpu.memory_space<vmem>>, vector<4x1x8xf32>
    %60 = vector.shape_cast %59 : vector<4x1x8xf32> to vector<4x8xf32>
    %61 = vector.shape_cast %58 : vector<4x8xf32> to vector<4x1x8xf32>
    tpu.vector_store %arg10[%c0_41, %c5_42, %c0_43], %61 {strides = array<i32>} : memref<4x8x8xf32, #tpu.memory_space<vmem>>, vector<4x1x8xf32>,
    %62 = vector.extract_strided_slice %13 {offsets = [0, 192], sizes = [4, 32], strides = [1, 1]} : vector<4x256xf32> to vector<4x32xf32>
    %c0_44 = arith.constant 0 : index
    %c6 = arith.constant 6 : index
    %c0_45 = arith.constant 0 : index
    %63 = vector.load %arg9[%c0_44, %c6, %c0_45] : memref<4x8x32xf32, #tpu.memory_space<vmem>>, vector<4x1x32xf32>
    %64 = vector.shape_cast %63 : vector<4x1x32xf32> to vector<4x32xf32>
    %65 = vector.shape_cast %62 : vector<4x32xf32> to vector<4x1x32xf32>
    tpu.vector_store %arg9[%c0_44, %c6, %c0_45], %65 {strides = array<i32>} : memref<4x8x32xf32, #tpu.memory_space<vmem>>, vector<4x1x32xf32>,
    %66 = vector.extract_strided_slice %8 {offsets = [0, 48], sizes = [4, 8], strides = [1, 1]} : vector<4x64xf32> to vector<4x8xf32>
    %c0_46 = arith.constant 0 : index
    %c6_47 = arith.constant 6 : index
    %c0_48 = arith.constant 0 : index
    %67 = vector.load %arg10[%c0_46, %c6_47, %c0_48] : memref<4x8x8xf32, #tpu.memory_space<vmem>>, vector<4x1x8xf32>
    %68 = vector.shape_cast %67 : vector<4x1x8xf32> to vector<4x8xf32>
    %69 = vector.shape_cast %66 : vector<4x8xf32> to vector<4x1x8xf32>
    tpu.vector_store %arg10[%c0_46, %c6_47, %c0_48], %69 {strides = array<i32>} : memref<4x8x8xf32, #tpu.memory_space<vmem>>, vector<4x1x8xf32>,
    %70 = vector.extract_strided_slice %13 {offsets = [0, 224], sizes = [4, 32], strides = [1, 1]} : vector<4x256xf32> to vector<4x32xf32>
    %c0_49 = arith.constant 0 : index
    %c7 = arith.constant 7 : index
    %c0_50 = arith.constant 0 : index
    %71 = vector.load %arg9[%c0_49, %c7, %c0_50] : memref<4x8x32xf32, #tpu.memory_space<vmem>>, vector<4x1x32xf32>
    %72 = vector.shape_cast %71 : vector<4x1x32xf32> to vector<4x32xf32>
    %73 = vector.shape_cast %70 : vector<4x32xf32> to vector<4x1x32xf32>
    tpu.vector_store %arg9[%c0_49, %c7, %c0_50], %73 {strides = array<i32>} : memref<4x8x32xf32, #tpu.memory_space<vmem>>, vector<4x1x32xf32>,
    %74 = vector.extract_strided_slice %8 {offsets = [0, 56], sizes = [4, 8], strides = [1, 1]} : vector<4x64xf32> to vector<4x8xf32>
    %c0_51 = arith.constant 0 : index
    %c7_52 = arith.constant 7 : index
    %c0_53 = arith.constant 0 : index
    %75 = vector.load %arg10[%c0_51, %c7_52, %c0_53] : memref<4x8x8xf32, #tpu.memory_space<vmem>>, vector<4x1x8xf32>
    %76 = vector.shape_cast %75 : vector<4x1x8xf32> to vector<4x8xf32>
    %77 = vector.shape_cast %74 : vector<4x8xf32> to vector<4x1x8xf32>
    tpu.vector_store %arg10[%c0_51, %c7_52, %c0_53], %77 {strides = array<i32>} : memref<4x8x8xf32, #tpu.memory_space<vmem>>, vector<4x1x8xf32>,
    %c0_54 = arith.constant 0 : index
    %c0_55 = arith.constant 0 : index
    %c0_56 = arith.constant 0 : index
    %78 = vector.load %arg9[%c0_54, %c0_55, %c0_56] : memref<4x8x32xf32, #tpu.memory_space<vmem>>, vector<4x8x32xf32>
    %79 = vector.shape_cast %78 : vector<4x8x32xf32> to vector<2x16x32xf32>
    %c0_57 = arith.constant 0 : index
    %c0_58 = arith.constant 0 : index
    %c0_59 = arith.constant 0 : index
    %80 = vector.load %arg10[%c0_57, %c0_58, %c0_59] : memref<4x8x8xf32, #tpu.memory_space<vmem>>, vector<4x8x8xf32>
    %81 = vector.shape_cast %80 : vector<4x8x8xf32> to vector<2x2x8x8xf32>
    "tpu.trace_start"() <{level = 10 : i32, message = "bld,bkd->blk"}> : () -> ()
    %cst_60 = arith.constant dense<0.000000e+00> : vector<2x8x16xf32>
    %82 = tpu.matmul %6, %79, %cst_60 {dimension_numbers = #tpu.dot_dimension_numbers<[2], [2], [1], [1], [0, 0, 0, 1, 1, 1], [0], [0]>} : vector<2x8x32xf32>, vector<2x16x32xf32>, vector<2x8x16xf32> -> vector<2x8x16xf32>
    "tpu.trace_stop"() : () -> ()
    %cst_61 = arith.constant 0.176776692 : f32
    %83 = vector.broadcast %cst_61 : f32 to vector<2x8x16xf32>
    %84 = arith.mulf %82, %83 : vector<2x8x16xf32>
    %cst_62 = arith.constant dense<0xFF800000> : vector<2x8xf32>
    %85 = vector.multi_reduction <maximumf>, %84, %cst_62 [2] : vector<2x8x16xf32> to vector<2x8xf32>
    %86 = vector.shape_cast %85 : vector<2x8xf32> to vector<2x8x1xf32>
    %87 = vector.broadcast %86 : vector<2x8x1xf32> to vector<2x8x16xf32>
    %88 = arith.subf %84, %87 : vector<2x8x16xf32>
    %89 = math.exp %88 : vector<2x8x16xf32>
    %cst_63 = arith.constant dense<0.000000e+00> : vector<2x8xf32>
    %90 = vector.multi_reduction <add>, %89, %cst_63 [2] : vector<2x8x16xf32> to vector<2x8xf32>
    %91 = vector.shape_cast %90 : vector<2x8xf32> to vector<2x8x1xf32>
    %92 = tpu.reciprocal %91 : vector<2x8x1xf32> -> vector<2x8x1xf32>
    %93 = vector.broadcast %92 : vector<2x8x1xf32> to vector<2x8x16xf32>
    %94 = arith.mulf %89, %93 : vector<2x8x16xf32>
    %95 = vector.extract_strided_slice %94 {offsets = [0, 0, 0], sizes = [2, 8, 8], strides = [1, 1, 1]} : vector<2x8x16xf32> to vector<2x8x8xf32>
    %96 = math.exp %95 : vector<2x8x8xf32>
    %97 = vector.extract_strided_slice %94 {offsets = [0, 0, 8], sizes = [2, 8, 8], strides = [1, 1, 1]} : vector<2x8x16xf32> to vector<2x8x8xf32>
    %98 = math.exp %97 : vector<2x8x8xf32>
    %99 = arith.addf %96, %98 : vector<2x8x8xf32>
    %100 = tpu.reciprocal %99 : vector<2x8x8xf32> -> vector<2x8x8xf32>
    %101 = vector.extract_strided_slice %81 {offsets = [0, 0, 0, 0], sizes = [2, 1, 8, 8], strides = [1, 1, 1, 1]} : vector<2x2x8x8xf32> to vector<2x1x8x8xf32>
    %102 = vector.shape_cast %101 : vector<2x1x8x8xf32> to vector<2x8x8xf32>
    %103 = arith.mulf %102, %96 : vector<2x8x8xf32>
    %104 = vector.extract_strided_slice %81 {offsets = [0, 1, 0, 0], sizes = [2, 1, 8, 8], strides = [1, 1, 1, 1]} : vector<2x2x8x8xf32> to vector<2x1x8x8xf32>
    %105 = vector.shape_cast %104 : vector<2x1x8x8xf32> to vector<2x8x8xf32>
    %106 = arith.mulf %105, %98 : vector<2x8x8xf32>
    %107 = arith.addf %103, %106 : vector<2x8x8xf32>
    %108 = arith.mulf %107, %100 : vector<2x8x8xf32>
    %c0_64 = arith.constant 0 : index
    %c0_65 = arith.constant 0 : index
    %109 = vector.load %arg2[%c0_64, %c0_65] : memref<16x32xf32, #tpu.memory_space<vmem>>, vector<16x32xf32>
    %110 = vector.shape_cast %109 : vector<16x32xf32> to vector<2x8x32xf32>
    "tpu.trace_start"() <{level = 10 : i32, message = "blm,bmd->bld"}> : () -> ()
    %cst_66 = arith.constant dense<0.000000e+00> : vector<2x8x32xf32>
    %111 = tpu.matmul %108, %110, %cst_66 {dimension_numbers = #tpu.dot_dimension_numbers<[2], [1], [1], [2], [0, 0, 0, 1, 1, 2], [0], [0]>} : vector<2x8x8xf32>, vector<2x8x32xf32>, vector<2x8x32xf32> -> vector<2x8x32xf32>
    "tpu.trace_stop"() : () -> ()
    %112 = vector.shape_cast %111 : vector<2x8x32xf32> to vector<16x32xf32>
    %c0_67 = arith.constant 0 : index
    %c0_68 = arith.constant 0 : index
    %113 = vector.load %arg8[%c0_67, %c0_68] : memref<16x32xf32, #tpu.memory_space<vmem>>, vector<16x32xf32>
    tpu.vector_store %arg8[%c0_67, %c0_68], %112 {strides = array<i32>} : memref<16x32xf32, #tpu.memory_space<vmem>>, vector<16x32xf32>,
    return
  }
  func.func @transform_0(%arg0: i32) -> (i32, i32) {
    %c0_i32 = arith.constant 0 : i32
    %c0_i32_0 = arith.constant 0 : i32
    return %arg0, %c0_i32 : i32, i32
  }
  func.func @transform_1(%arg0: i32) -> (i32, i32) {
    %c0_i32 = arith.constant 0 : i32
    %c0_i32_0 = arith.constant 0 : i32
    return %arg0, %c0_i32 : i32, i32
  }
  func.func @transform_2(%arg0: i32) -> (i32, i32, i32) {
    %c0_i32 = arith.constant 0 : i32
    %c0_i32_0 = arith.constant 0 : i32
    %c0_i32_1 = arith.constant 0 : i32
    return %arg0, %c0_i32, %c0_i32_0 : i32, i32, i32
  }
  func.func @transform_3(%arg0: i32) -> (i32, i32) {
    %c0_i32 = arith.constant 0 : i32
    %c0_i32_0 = arith.constant 0 : i32
    %c0_i32_1 = arith.constant 0 : i32
    return %c0_i32, %c0_i32_0 : i32, i32
  }
  func.func @transform_4(%arg0: i32) -> (i32, i32) {
    %c0_i32 = arith.constant 0 : i32
    %c0_i32_0 = arith.constant 0 : i32
    %c0_i32_1 = arith.constant 0 : i32
    return %c0_i32, %c0_i32_0 : i32, i32
  }
  func.func @transform_5(%arg0: i32) -> (i32, i32) {
    %c0_i32 = arith.constant 0 : i32
    %c0_i32_0 = arith.constant 0 : i32
    %c0_i32_1 = arith.constant 0 : i32
    return %c0_i32, %c0_i32_0 : i32, i32
  }
  func.func @transform_6(%arg0: i32) -> (i32, i32) {
    %c0_i32 = arith.constant 0 : i32
    %c0_i32_0 = arith.constant 0 : i32
    %c0_i32_1 = arith.constant 0 : i32
    return %c0_i32, %c0_i32_0 : i32, i32
  }
  func.func @transform_7(%arg0: i32) -> (i32, i32) {
    %c0_i32 = arith.constant 0 : i32
    %c0_i32_0 = arith.constant 0 : i32
    return %arg0, %c0_i32 : i32, i32
  }
}

</mosaic_0001>

<llo_original>
// kernel: tpu_custom_call.1
$region0: #{tpu_custom_call.1}
  #allocation0 [shape = 'u32[]', space=smem, size = 0x4, offset = 0x4, fixed_abs, tag = 'smem constant byte address 0x4 - core index']
  #allocation1 [shape = 'u32[72,128]{1,0:T(1,128)}', space=vmem, size = 0x9000, scoped, tag = 'internal scratch']
  #allocation2 [shape = 'f32[4,8,32]{2,1,0:T(8,128)}', space=vmem, size = 0x4000, scoped, tag = 'scratch operand']
  #allocation3 [shape = 'f32[4,8,8]{2,1,0:T(8,128)}', space=vmem, size = 0x4000, scoped, tag = 'scratch operand']
  %s0 = inlined_call_operand.hbm [shape: f32[32,32], index: 0, kind: input, shape index: {}]
  %s1 = inlined_call_operand.hbm [shape: f32[32,32], index: 1, kind: input, shape index: {}]
  %s2 = inlined_call_operand.hbm [shape: f32[2,4,64], index: 2, kind: input, shape index: {}]
  %s3 = inlined_call_operand.hbm [shape: f32[32,32], index: 3, kind: input, shape index: {}]
  %s4 = inlined_call_operand.vmem [shape: f32[1,32], index: 4, kind: input, shape index: {}]
  %s5 = inlined_call_operand.hbm [shape: f32[64,256], index: 5, kind: input, shape index: {}]
  %s6 = inlined_call_operand.vmem [shape: f32[1,256], index: 6, kind: input, shape index: {}]
  %s7 = inlined_call_operand.hbm [shape: f32[32,32], index: 7, kind: output, shape index: {}]
  %s8 = sld [smem:[#allocation0]]
  $region81: #{tpu_custom_call.1} parent=0
    _
  %s10 = ssub.s32 1, %s8
  %s11 = scalar_select 0, %s10, %s8
  $region1: #{tpu_custom_call.1} parent=0
    #allocation4 [shape = 'u8[16384]{0}', space=vmem, size = 0x4000, scoped, tag = 'input window, operand 0']
    #allocation5 [shape = 's32[2]{0}', space=sflag, size = 0x8, scoped, tag = 'scoped memory for tpu_custom_call.1']
    #allocation6 [shape = 's32[2]{0}', space=sflag, size = 0x8, scoped, tag = 'scoped memory for tpu_custom_call.1']
    #allocation7 [shape = 'u8[16384]{0}', space=vmem, size = 0x4000, scoped, tag = 'input window, operand 1']
    #allocation8 [shape = 's32[2]{0}', space=sflag, size = 0x8, scoped, tag = 'scoped memory for tpu_custom_call.1']
    #allocation9 [shape = 'u8[4096]{0}', space=vmem, size = 0x1000, scoped, tag = 'input window, operand 2']
    #allocation10 [shape = 'u8[16384]{0}', space=vmem, size = 0x4000, scoped, tag = 'input window, operand 3, single buffered']
    #allocation11 [shape = 's32[1]{0}', space=sflag, size = 0x4, scoped, tag = 'scoped memory for tpu_custom_call.1']
    #allocation12 [shape = 'u8[65536]{0}', space=vmem, size = 0x10000, scoped, tag = 'input window, operand 5, single buffered']
    #allocation13 [shape = 'u8[16384]{0}', space=vmem, size = 0x4000, scoped, tag = 'output window, operand 0']
    %12 = vsyncpa [#allocation5], 0
    %s13 = scalar_lea.sflag [#allocation5], 1
    %14 = vsyncpa %s13, 0
    %15 = vsyncpa [#allocation8], 0
    %s16 = scalar_lea.sflag [#allocation8], 1
    %17 = vsyncpa %s16, 0
    %18 = vsyncpa [#allocation11], 0
    %19 = vsyncpa [#allocation6], 0
    %s20 = scalar_lea.sflag [#allocation6], 1
    %21 = vsyncpa %s20, 0
    loop: start=0, step=1, limit=4
    $region2: #{tpu_custom_call.1} parent=1 // loop_pre_header
      _
    $region3: #{tpu_custom_call.1} parent=1 // loop_header
      %s23 = sphi 0, %s27
      %p24 = scmp.ge.s32.totalorder %s23, 4
      %s33 = sphi 0, %s35
      %s36 = sphi 0, %s33
      %s37 = sphi 0, %s36
      %s53 = sphi 0, %s37
      %s59 = sphi 0, %s61
      %s62 = sphi 0, %s59
      %s63 = sphi 0, %s62
      %s79 = sphi 0, %s63
      %s85 = sphi 0, %s87
      %s88 = sphi 0, %s85
      %s89 = sphi 0, %s88
      %s105 = sphi 0, %s89
      %s109 = sphi 0, %s109
      %s111 = sphi 0, %s109
      %s112 = sphi 0, %s111
      %s126 = sphi 0, %s112
      %s130 = sphi 0, %s130
      %s132 = sphi 0, %s130
      %s133 = sphi 0, %s132
      %s147 = sphi 0, %s133
      %s151 = sphi 0, %s151
      %s153 = sphi 0, %s151
      %s154 = sphi 0, %s153
      %s168 = sphi 0, %s154
      %s172 = sphi 0, %s172
      %s174 = sphi 0, %s172
      %s175 = sphi 0, %s174
      %s189 = sphi 0, %s175
      %s195 = sphi 0, %s197
      %s198 = sphi 0, %s195
      %s199 = sphi 0, %s198
      %s215 = sphi 0, %s199
    $region4: #{tpu_custom_call.1} parent=1 // loop_header_branch
      %26 = sbr.rel (%p24) target = $region8
    $region5: #{tpu_custom_call.1} parent=1 // loop_body
      %s28 = ssub.s32 %s23, 1
      %s29 = ssub.s32 %s23, 2
      %s30 = sadd.s32 %s23, 1
      %s31 = ssub.s32 %s23, %s30
      %p32 = scmp.eq.s32.totalorder %s31, 0
      %s34 = sadd.s32 %s33, 1
      %s35 = scalar_select %p32, %s33, %s34
      %p38 = pneg %p32
      %p39 = scmp.eq.s32.totalorder %s23, 1
      %p40 = por %p38, %p39
      %p41 = scmp.ne.s32.totalorder %s33, %s36
      %p42 = scmp.eq.s32.totalorder %s23, 0
      %p43 = por %p41, %p42
      %p44 = scmp.ne.s32.totalorder %s33, %s36
      %p45 = scmp.eq.s32.totalorder %s28, 1
      %p46 = por %p44, %p45
      %p47 = scmp.ne.s32.totalorder %s36, %s37
      %p48 = scmp.eq.s32.totalorder %s28, 0
      %p49 = por %p47, %p48
      %p50 = scmp.ne.s32.totalorder %s36, %s37
      %p51 = scmp.eq.s32.totalorder %s29, 1
      %p52 = por %p50, %p51
      %p54 = scmp.ne.s32.totalorder %s37, %s53
      %p55 = scmp.eq.s32.totalorder %s29, 0
      %p56 = por %p54, %p55
      %s57 = ssub.s32 %s23, %s30
      %p58 = scmp.eq.s32.totalorder %s57, 0
      %s60 = sadd.s32 %s59, 1
      %s61 = scalar_select %p58, %s59, %s60
      %p64 = pneg %p58
      %p65 = scmp.eq.s32.totalorder %s23, 1
      %p66 = por %p64, %p65
      %p67 = scmp.ne.s32.totalorder %s59, %s62
      %p68 = scmp.eq.s32.totalorder %s23, 0
      %p69 = por %p67, %p68
      %p70 = scmp.ne.s32.totalorder %s59, %s62
      %p71 = scmp.eq.s32.totalorder %s28, 1
      %p72 = por %p70, %p71
      %p73 = scmp.ne.s32.totalorder %s62, %s63
      %p74 = scmp.eq.s32.totalorder %s28, 0
      %p75 = por %p73, %p74
      %p76 = scmp.ne.s32.totalorder %s62, %s63
      %p77 = scmp.eq.s32.totalorder %s29, 1
      %p78 = por %p76, %p77
      %p80 = scmp.ne.s32.totalorder %s63, %s79
      %p81 = scmp.eq.s32.totalorder %s29, 0
      %p82 = por %p80, %p81
      %s83 = ssub.s32 %s23, %s30
      %p84 = scmp.eq.s32.totalorder %s83, 0
      %s86 = sadd.s32 %s85, 1
      %s87 = scalar_select %p84, %s85, %s86
      %p90 = pneg %p84
      %p91 = scmp.eq.s32.totalorder %s23, 1
      %p92 = por %p90, %p91
      %p93 = scmp.ne.s32.totalorder %s85, %s88
      %p94 = scmp.eq.s32.totalorder %s23, 0
      %p95 = por %p93, %p94
      %p96 = scmp.ne.s32.totalorder %s85, %s88
      %p97 = scmp.eq.s32.totalorder %s28, 1
      %p98 = por %p96, %p97
      %p99 = scmp.ne.s32.totalorder %s88, %s89
      %p100 = scmp.eq.s32.totalorder %s28, 0
      %p101 = por %p99, %p100
      %p102 = scmp.ne.s32.totalorder %s88, %s89
      %p103 = scmp.eq.s32.totalorder %s29, 1
      %p104 = por %p102, %p103
      %p106 = scmp.ne.s32.totalorder %s89, %s105
      %p107 = scmp.eq.s32.totalorder %s29, 0
      %p108 = por %p106, %p107
      %s110 = sadd.s32 %s109, 1
      %p113 = scmp.eq.s32.totalorder %s23, 1
      %p114 = scmp.ne.s32.totalorder %s109, %s111
      %p115 = scmp.eq.s32.totalorder %s23, 0
      %p116 = por %p114, %p115
      %p117 = scmp.ne.s32.totalorder %s109, %s111
      %p118 = scmp.eq.s32.totalorder %s28, 1
      %p119 = por %p117, %p118
      %p120 = scmp.ne.s32.totalorder %s111, %s112
      %p121 = scmp.eq.s32.totalorder %s28, 0
      %p122 = por %p120, %p121
      %p123 = scmp.ne.s32.totalorder %s111, %s112
      %p124 = scmp.eq.s32.totalorder %s29, 1
      %p125 = por %p123, %p124
      %p127 = scmp.ne.s32.totalorder %s112, %s126
      %p128 = scmp.eq.s32.totalorder %s29, 0
      %p129 = por %p127, %p128
      %s131 = sadd.s32 %s130, 1
      %p134 = scmp.eq.s32.totalorder %s23, 1
      %p135 = scmp.ne.s32.totalorder %s130, %s132
      %p136 = scmp.eq.s32.totalorder %s23, 0
      %p137 = por %p135, %p136
      %p138 = scmp.ne.s32.totalorder %s130, %s132
      %p139 = scmp.eq.s32.totalorder %s28, 1
      %p140 = por %p138, %p139
      %p141 = scmp.ne.s32.totalorder %s132, %s133
      %p142 = scmp.eq.s32.totalorder %s28, 0
      %p143 = por %p141, %p142
      %p144 = scmp.ne.s32.totalorder %s132, %s133
      %p145 = scmp.eq.s32.totalorder %s29, 1
      %p146 = por %p144, %p145
      %p148 = scmp.ne.s32.totalorder %s133, %s147
      %p149 = scmp.eq.s32.totalorder %s29, 0
      %p150 = por %p148, %p149
      %s152 = sadd.s32 %s151, 1
      %p155 = scmp.eq.s32.totalorder %s23, 1
      %p156 = scmp.ne.s32.totalorder %s151, %s153
      %p157 = scmp.eq.s32.totalorder %s23, 0
      %p158 = por %p156, %p157
      %p159 = scmp.ne.s32.totalorder %s151, %s153
      %p160 = scmp.eq.s32.totalorder %s28, 1
      %p161 = por %p159, %p160
      %p162 = scmp.ne.s32.totalorder %s153, %s154
      %p163 = scmp.eq.s32.totalorder %s28, 0
      %p164 = por %p162, %p163
      %p165 = scmp.ne.s32.totalorder %s153, %s154
      %p166 = scmp.eq.s32.totalorder %s29, 1
      %p167 = por %p165, %p166
      %p169 = scmp.ne.s32.totalorder %s154, %s168
      %p170 = scmp.eq.s32.totalorder %s29, 0
      %p171 = por %p169, %p170
      %s173 = sadd.s32 %s172, 1
      %p176 = scmp.eq.s32.totalorder %s23, 1
      %p177 = scmp.ne.s32.totalorder %s172, %s174
      %p178 = scmp.eq.s32.totalorder %s23, 0
      %p179 = por %p177, %p178
      %p180 = scmp.ne.s32.totalorder %s172, %s174
      %p181 = scmp.eq.s32.totalorder %s28, 1
      %p182 = por %p180, %p181
      %p183 = scmp.ne.s32.totalorder %s174, %s175
      %p184 = scmp.eq.s32.totalorder %s28, 0
      %p185 = por %p183, %p184
      %p186 = scmp.ne.s32.totalorder %s174, %s175
      %p187 = scmp.eq.s32.totalorder %s29, 1
      %p188 = por %p186, %p187
      %p190 = scmp.ne.s32.totalorder %s175, %s189
      %p191 = scmp.eq.s32.totalorder %s29, 0
      %p192 = por %p190, %p191
      %s193 = ssub.s32 %s23, %s30
      %p194 = scmp.eq.s32.totalorder %s193, 0
      %s196 = sadd.s32 %s195, 1
      %s197 = scalar_select %p194, %s195, %s196
      %p200 = pneg %p194
      %p201 = scmp.eq.s32.totalorder %s23, 1
      %p202 = por %p200, %p201
      %p203 = scmp.ne.s32.totalorder %s195, %s198
      %p204 = scmp.eq.s32.totalorder %s23, 0
      %p205 = por %p203, %p204
      %p206 = scmp.ne.s32.totalorder %s195, %s198
      %p207 = scmp.eq.s32.totalorder %s28, 1
      %p208 = por %p206, %p207
      %p209 = scmp.ne.s32.totalorder %s198, %s199
      %p210 = scmp.eq.s32.totalorder %s28, 0
      %p211 = por %p209, %p210
      %p212 = scmp.ne.s32.totalorder %s198, %s199
      %p213 = scmp.eq.s32.totalorder %s29, 1
      %p214 = por %p212, %p213
      %p216 = scmp.ne.s32.totalorder %s199, %s215
      %p217 = scmp.eq.s32.totalorder %s29, 0
      %p218 = por %p216, %p217
      %p219 = scmp.le.s32.totalorder 1, %s23
      %p220 = scmp.lt.s32.totalorder %s23, 3
      %p221 = pnand %p219, %p220
      %p222 = pneg %p221
      // Predicated region
      $region9: #{tpu_custom_call.1} parent=5 // pred_check
        _
      $region10: #{tpu_custom_call.1} parent=5 // pred_check_branch
        %224 = sbr.rel (%p221) target = $region12
      $region11: #{tpu_custom_call.1} parent=5 // pred_region
        %s225 = ssub.s32 %s23, 1
        // Predicated region
        $region13: #{tpu_custom_call.1} parent=11 // pred_check
          %p226 = pneg %p122
        $region14: #{tpu_custom_call.1} parent=11 // pred_check_branch
          %228 = sbr.rel (%p226) target = $region16
        $region15: #{tpu_custom_call.1} parent=11 // pred_region
          %230 = vsyncadd [#allocation11], 0
          %s231 = sshll.u32 %s3, 4
          %s232 = int_to_ptr.hbm [resolvable:$true] %s231
          %s233 = sshll.u32 [#allocation10], 4
          %s234 = int_to_ptr.vmem [resolvable:$true] %s233
          %239 = dma.hbm_to_vmem [thread:$0]  %s232, 512, %s234, [#allocation11], 128, 128, 8
        $region16: #{tpu_custom_call.1} parent=11 // pred_fallthru
          _
        // Predicated region
        $region17: #{tpu_custom_call.1} parent=11 // pred_check
          %p240 = pneg %p143
        $region18: #{tpu_custom_call.1} parent=11 // pred_check_branch
          %242 = sbr.rel (%p240) target = $region20
        $region19: #{tpu_custom_call.1} parent=11 // pred_region
          _
        $region20: #{tpu_custom_call.1} parent=11 // pred_fallthru
          _
        // Predicated region
        $region21: #{tpu_custom_call.1} parent=11 // pred_check
          %p243 = pneg %p164
        $region22: #{tpu_custom_call.1} parent=11 // pred_check_branch
          %245 = sbr.rel (%p243) target = $region24
        $region23: #{tpu_custom_call.1} parent=11 // pred_region
          %247 = vsyncadd [#allocation11], 0
          %s248 = sshll.u32 %s5, 4
          %s249 = int_to_ptr.hbm [resolvable:$true] %s248
          %s250 = sshll.u32 [#allocation12], 4
          %s251 = int_to_ptr.vmem [resolvable:$true] %s250
          %256 = dma.hbm_to_vmem [thread:$0]  %s249, 2048, %s251, [#allocation11], 256, 256, 16
        $region24: #{tpu_custom_call.1} parent=11 // pred_fallthru
          _
        // Predicated region
        $region25: #{tpu_custom_call.1} parent=11 // pred_check
          %p257 = pneg %p185
        $region26: #{tpu_custom_call.1} parent=11 // pred_check_branch
          %259 = sbr.rel (%p257) target = $region28
        $region27: #{tpu_custom_call.1} parent=11 // pred_region
          _
        $region28: #{tpu_custom_call.1} parent=11 // pred_fallthru
          _
      $region12: #{tpu_custom_call.1} parent=5 // pred_fallthru
        _
      %p260 = scmp.lt.s32.totalorder %s23, 2
      // Predicated region
      $region29: #{tpu_custom_call.1} parent=5 // pred_check
        %p261 = pneg %p260
      $region30: #{tpu_custom_call.1} parent=5 // pred_check_branch
        %263 = sbr.rel (%p261) target = $region32
      $region31: #{tpu_custom_call.1} parent=5 // pred_region
        // Predicated region
        $region33: #{tpu_custom_call.1} parent=31 // pred_check
          %p264 = pneg %p43
        $region34: #{tpu_custom_call.1} parent=31 // pred_check_branch
          %266 = sbr.rel (%p264) target = $region36
        $region35: #{tpu_custom_call.1} parent=31 // pred_region
          %s267 = sand.u32 %s33, 1
          %s268 = scalar_lea.sflag [#allocation5], %s267
          %s269 = sand.u32 %s33, 1
          %s270 = smul.addr %s269, 16
          %s271 = scalar_lea.vmem [#allocation4], %s270
          %s272 = smul.u32 2, %s23
          %274 = vsyncadd %s268, 0
          %s275 = smul.addr %s272, 8
          %s276 = scalar_lea.hbm %s0, %s275
          %s277 = sshll.u32 %s276, 4
          %s278 = int_to_ptr.hbm [resolvable:$true] %s277
          %s279 = sshll.u32 %s271, 4
          %s280 = int_to_ptr.vmem [resolvable:$true] %s279
          %285 = dma.hbm_to_vmem [thread:$0]  %s278, 256, %s280, %s268, 128, 128, 8
        $region36: #{tpu_custom_call.1} parent=31 // pred_fallthru
          _
        // Predicated region
        $region37: #{tpu_custom_call.1} parent=31 // pred_check
          %p286 = pneg %p69
        $region38: #{tpu_custom_call.1} parent=31 // pred_check_branch
          %288 = sbr.rel (%p286) target = $region40
        $region39: #{tpu_custom_call.1} parent=31 // pred_region
          %s289 = sand.u32 %s23, 1
          %s290 = scalar_lea.sflag [#allocation8], %s289
          %s291 = sand.u32 %s59, 1
          %s292 = smul.addr %s291, 16
          %s293 = scalar_lea.vmem [#allocation7], %s292
          %s294 = smul.u32 2, %s23
          %296 = vsyncadd %s290, 0
          %s297 = smul.addr %s294, 8
          %s298 = scalar_lea.hbm %s1, %s297
          %s299 = sshll.u32 %s298, 4
          %s300 = int_to_ptr.hbm [resolvable:$true] %s299
          %s301 = sshll.u32 %s293, 4
          %s302 = int_to_ptr.vmem [resolvable:$true] %s301
          %307 = dma.hbm_to_vmem [thread:$0]  %s300, 256, %s302, %s290, 128, 128, 8
        $region40: #{tpu_custom_call.1} parent=31 // pred_fallthru
          _
        // Predicated region
        $region41: #{tpu_custom_call.1} parent=31 // pred_check
          %p308 = pneg %p95
        $region42: #{tpu_custom_call.1} parent=31 // pred_check_branch
          %310 = sbr.rel (%p308) target = $region44
        $region43: #{tpu_custom_call.1} parent=31 // pred_region
          %s311 = sand.u32 %s23, 1
          %s312 = scalar_lea.sflag [#allocation8], %s311
          %s313 = sand.u32 %s85, 1
          %s314 = smul.addr %s313, 4
          %s315 = scalar_lea.vmem [#allocation9], %s314
          %317 = vsyncadd %s312, 0
          %s318 = smul.addr %s23, 4
          %s319 = scalar_lea.hbm %s2, %s318
          %s321 = sshll.u32 %s319, 4
          %s322 = int_to_ptr.hbm [resolvable:$true] %s321
          %s323 = sshll.u32 %s315, 4
          %s324 = int_to_ptr.vmem [resolvable:$true] %s323
          %326 = dma.hbm_to_vmem [thread:$0]  %s322, 64, %s324, %s312
        $region44: #{tpu_custom_call.1} parent=31 // pred_fallthru
          _
      $region32: #{tpu_custom_call.1} parent=5 // pred_fallthru
        _
      %p327 = scmp.le.s32.totalorder 1, %s23
      %p328 = scmp.lt.s32.totalorder %s23, 3
      %p329 = pnand %p327, %p328
      %p330 = pneg %p329
      // Predicated region
      $region45: #{tpu_custom_call.1} parent=5 // pred_check
        _
      $region46: #{tpu_custom_call.1} parent=5 // pred_check_branch
        %332 = sbr.rel (%p329) target = $region48
      $region47: #{tpu_custom_call.1} parent=5 // pred_region
        %s333 = ssub.s32 %s23, 1
        %s334 = sand.u32 %s36, 1
        %s335 = scalar_lea.sflag [#allocation5], %s334
        %s336 = sand.u32 %s36, 1
        %s337 = smul.addr %s336, 16
        %s338 = scalar_lea.vmem [#allocation4], %s337
        // Predicated region
        $region49: #{tpu_custom_call.1} parent=47 // pred_check
          %p339 = pneg %p49
        $region50: #{tpu_custom_call.1} parent=47 // pred_check_branch
          %341 = sbr.rel (%p339) target = $region52
        $region51: #{tpu_custom_call.1} parent=47 // pred_region
          %343 = dma.done %s335, 256
        $region52: #{tpu_custom_call.1} parent=47 // pred_fallthru
          _
        %s344 = sand.u32 %s28, 1
        %s345 = scalar_lea.sflag [#allocation8], %s344
        %s346 = sand.u32 %s62, 1
        %s347 = smul.addr %s346, 16
        %s348 = scalar_lea.vmem [#allocation7], %s347
        // Predicated region
        $region53: #{tpu_custom_call.1} parent=47 // pred_check
          %p349 = pneg %p75
        $region54: #{tpu_custom_call.1} parent=47 // pred_check_branch
          %351 = sbr.rel (%p349) target = $region56
        $region55: #{tpu_custom_call.1} parent=47 // pred_region
          %353 = dma.done %s345, 256
        $region56: #{tpu_custom_call.1} parent=47 // pred_fallthru
          _
        %s354 = sand.u32 %s28, 1
        %s355 = scalar_lea.sflag [#allocation8], %s354
        %s356 = sand.u32 %s88, 1
        %s357 = smul.addr %s356, 4
        %s358 = scalar_lea.vmem [#allocation9], %s357
        // Predicated region
        $region57: #{tpu_custom_call.1} parent=47 // pred_check
          %p359 = pneg %p101
        $region58: #{tpu_custom_call.1} parent=47 // pred_check_branch
          %361 = sbr.rel (%p359) target = $region60
        $region59: #{tpu_custom_call.1} parent=47 // pred_region
          %363 = dma.done %s355, 64
        $region60: #{tpu_custom_call.1} parent=47 // pred_fallthru
          _
        // Predicated region
        $region61: #{tpu_custom_call.1} parent=47 // pred_check
          %p364 = pneg %p122
        $region62: #{tpu_custom_call.1} parent=47 // pred_check_branch
          %366 = sbr.rel (%p364) target = $region64
        $region63: #{tpu_custom_call.1} parent=47 // pred_region
          %368 = dma.done [#allocation11], 512
        $region64: #{tpu_custom_call.1} parent=47 // pred_fallthru
          _
        // Predicated region
        $region65: #{tpu_custom_call.1} parent=47 // pred_check
          %p369 = pneg %p164
        $region66: #{tpu_custom_call.1} parent=47 // pred_check_branch
          %371 = sbr.rel (%p369) target = $region68
        $region67: #{tpu_custom_call.1} parent=47 // pred_region
          %373 = dma.done [#allocation11], 2048
        $region68: #{tpu_custom_call.1} parent=47 // pred_fallthru
          _
        %s374 = sand.u32 %s36, 1
        %s375 = scalar_lea.sflag [#allocation5], %s374
        %s376 = sand.u32 %s36, 1
        %s377 = smul.addr %s376, 16
        %s378 = scalar_lea.vmem [#allocation4], %s377
        %p379 = pneg %p49
        %p380 = pneg %p46
        %s381 = sand.u32 %s28, 1
        %s382 = scalar_lea.sflag [#allocation8], %s381
        %s383 = sand.u32 %s62, 1
        %s384 = smul.addr %s383, 16
        %s385 = scalar_lea.vmem [#allocation7], %s384
        %p386 = pneg %p75
        %p387 = pneg %p72
        %s388 = sand.u32 %s28, 1
        %s389 = scalar_lea.sflag [#allocation8], %s388
        %s390 = sand.u32 %s88, 1
        %s391 = smul.addr %s390, 4
        %s392 = scalar_lea.vmem [#allocation9], %s391
        %p393 = pneg %p101
        %p394 = pneg %p98
        %p395 = pneg %p122
        %p396 = pneg %p119
        %p397 = pneg %p143
        %p398 = pneg %p140
        %p399 = pneg %p164
        %p400 = pneg %p161
        %p401 = pneg %p185
        %p402 = pneg %p182
        %p403 = pneg %p211
        %p404 = pneg %p208
        %s405 = sand.u32 %s198, 1
        %s406 = scalar_lea.sflag [#allocation6], %s405
        %s407 = sand.u32 %s198, 1
        %s408 = smul.addr %s407, 16
        %s409 = scalar_lea.vmem [#allocation13], %s408
        %s410 = smul.u32 2, %s28
        %s411 = smul.u32 2, %s28
        %s412 = smul.u32 2, %s28
        %v413 = vld [vmem:[%s338] sm:$0xff]
        %v414 = vld [vmem:[%s338 + $0x8] sm:$0xff]
        %v415 = vld [vmem:[#allocation10] sm:$0xff]
        %v416 = vld [vmem:[#allocation10 + $0x8] sm:$0xff]
        %v417 = vld [vmem:[#allocation10 + $0x10] sm:$0xff]
        %v418 = vld [vmem:[#allocation10 + $0x18] sm:$0xff]
        %v419 = vld [vmem:[%s4] sm:$0x1]
        %v421 = vperm.slane %v419, 0
        %vm423 = vcmask 261120
        %v425 = vsel %vm423, %v413, 0
        %v428 = vsel %vm423, %v414, 0
        %430 = vmatpush.msra.mxu0 0.0
        %431 = vmatpush.msra.mxu0 0.0
        %432 = vmatpush.msra.mxu0 0.0
        %433 = vmatpush.msra.mxu0 0.0
        %434 = vmatpush.msra.mxu0 0.0
        %435 = vmatpush.msra.mxu0 0.0
        %436 = vmatpush.msra.mxu0 0.0
        %437 = vmatpush.msra.mxu0 0.0
        %438 = vmatpush.msra.mxu0 0.0
        %439 = vmatpush.msra.mxu0 0.0
        %440 = vmatpush.msra.mxu0 0.0
        %441 = vmatpush.msra.mxu0 0.0
        %442 = vmatpush.msra.mxu0 %v418
        %443 = vmatpush.msra.mxu0 %v417
        %444 = vmatpush.msra.mxu0 %v416
        %445 = vmatpush.msra.mxu0 %v415
        %446 = vmatmul.f32.gmra.mxu0 %v425
        %v447 = vpop.f32.mrf.mxu0
        %v448 = vadd.f32 %v421, %v447
        %449 = vmatmul.f32.gmra.mxu0 %v428
        %v450 = vpop.f32.mrf.mxu0
        %v451 = vadd.f32 %v421, %v450
        %452 = vdwg.mxu0
        %v453 = vld [vmem:[%s358] sm:$0xf]
        %v454 = vld [vmem:[#allocation12] sm:$0xff]
        %v455 = vld [vmem:[#allocation12 + $0x8] sm:$0xff]
        %v456 = vld [vmem:[#allocation12 + $0x10] sm:$0xff]
        %v457 = vld [vmem:[#allocation12 + $0x18] sm:$0xff]
        %v458 = vld [vmem:[#allocation12 + $0x20] sm:$0xff]
        %v459 = vld [vmem:[#allocation12 + $0x28] sm:$0xff]
        %v460 = vld [vmem:[#allocation12 + $0x30] sm:$0xff]
        %v461 = vld [vmem:[#allocation12 + $0x38] sm:$0xff]
        %v462 = vld [vmem:[#allocation12 + $0x40] sm:$0xff]
        %v463 = vld [vmem:[#allocation12 + $0x48] sm:$0xff]
        %v464 = vld [vmem:[#allocation12 + $0x50] sm:$0xff]
        %v465 = vld [vmem:[#allocation12 + $0x58] sm:$0xff]
        %v466 = vld [vmem:[#allocation12 + $0x60] sm:$0xff]
        %v467 = vld [vmem:[#allocation12 + $0x68] sm:$0xff]
        %v468 = vld [vmem:[#allocation12 + $0x70] sm:$0xff]
        %v469 = vld [vmem:[#allocation12 + $0x78] sm:$0xff]
        %v470 = vld [vmem:[%s6] sm:$0x3]
        %v472 = vperm.slane %v470, 0
        %v473 = vperm.slane %v470, 1
        %vm476 = vcmask 523264
        %v478 = vsel %vm476, %v453, 0
        %480 = vmatpush.msra.mxu0 0.0
        %481 = vmatpush.msra.mxu0 0.0
        %482 = vmatpush.msra.mxu0 0.0
        %483 = vmatpush.msra.mxu0 0.0
        %484 = vmatpush.msra.mxu0 0.0
        %485 = vmatpush.msra.mxu0 0.0
        %486 = vmatpush.msra.mxu0 0.0
        %487 = vmatpush.msra.mxu0 0.0
        %488 = vmatpush.msra.mxu0 %v468
        %489 = vmatpush.msra.mxu0 %v466
        %490 = vmatpush.msra.mxu0 %v464
        %491 = vmatpush.msra.mxu0 %v462
        %492 = vmatpush.msra.mxu0 %v460
        %493 = vmatpush.msra.mxu0 %v458
        %494 = vmatpush.msra.mxu0 %v456
        %495 = vmatpush.msra.mxu0 %v454
        %496 = vmatmul.f32.gmra.mxu0 %v478
        %v497 = vpop.f32.mrf.mxu0
        %v498 = vadd.f32 %v472, %v497
        %499 = vdwg.mxu0
        %500 = vmatpush.msra.mxu0 0.0
        %501 = vmatpush.msra.mxu0 0.0
        %502 = vmatpush.msra.mxu0 0.0
        %503 = vmatpush.msra.mxu0 0.0
        %504 = vmatpush.msra.mxu0 0.0
        %505 = vmatpush.msra.mxu0 0.0
        %506 = vmatpush.msra.mxu0 0.0
        %507 = vmatpush.msra.mxu0 0.0
        %508 = vmatpush.msra.mxu0 %v469
        %509 = vmatpush.msra.mxu0 %v467
        %510 = vmatpush.msra.mxu0 %v465
        %511 = vmatpush.msra.mxu0 %v463
        %512 = vmatpush.msra.mxu0 %v461
        %513 = vmatpush.msra.mxu0 %v459
        %514 = vmatpush.msra.mxu0 %v457
        %515 = vmatpush.msra.mxu0 %v455
        %516 = vmatmul.f32.gmra.mxu0 %v478
        %v517 = vpop.f32.mrf.mxu0
        %v518 = vadd.f32 %v473, %v517
        %519 = vdwg.mxu0
        %v521 = vrot.slane %v498, 1
        %v522 = vrot.slane %v498, 2
        %v523 = vrot.slane %v498, 3
        %vm527 = vcmask 253952
        %528 = vst.msk [vmem:[#allocation2] sm:$0x1] %vm527, %v498
        %529 = vst.msk [vmem:[#allocation2 + $0x8] sm:$0x1] %vm527, %v521
        %530 = vst.msk [vmem:[#allocation2 + $0x10] sm:$0x1] %vm527, %v522
        %531 = vst.msk [vmem:[#allocation2 + $0x18] sm:$0x1] %vm527, %v523
        %v532 = vrot.slane %v453, 1
        %v533 = vrot.slane %v453, 2
        %v534 = vrot.slane %v453, 3
        %vm538 = vcmask 57344
        %539 = vst.msk [vmem:[#allocation3] sm:$0x1] %vm538, %v453
        %540 = vst.msk [vmem:[#allocation3 + $0x8] sm:$0x1] %vm538, %v532
        %541 = vst.msk [vmem:[#allocation3 + $0x10] sm:$0x1] %vm538, %v533
        %542 = vst.msk [vmem:[#allocation3 + $0x18] sm:$0x1] %vm538, %v534
        %v543 = vperm.slane %v498, 0
        %v544 = vperm.slane %v521, 0
        %v545 = vperm.slane %v522, 0
        %v546 = vperm.slane %v523, 0
        %547 = vrot.lane.b32.xlu0 %v543, 96
        %v548 = vpop.permute.xlu0 %547
        %549 = vrot.lane.b32.xlu0 %v544, 96
        %v550 = vpop.permute.xlu0 %549
        %551 = vrot.lane.b32.xlu0 %v545, 96
        %v552 = vpop.permute.xlu0 %551
        %553 = vrot.lane.b32.xlu0 %v546, 96
        %v554 = vpop.permute.xlu0 %553
        %559 = vst.msk [vmem:[#allocation2 + $0x1] sm:$0x1] %vm527, %v548
        %560 = vst.msk [vmem:[#allocation2 + $0x9] sm:$0x1] %vm527, %v550
        %561 = vst.msk [vmem:[#allocation2 + $0x11] sm:$0x1] %vm527, %v552
        %562 = vst.msk [vmem:[#allocation2 + $0x19] sm:$0x1] %vm527, %v554
        %v563 = vperm.slane %v453, 0
        %v564 = vperm.slane %v532, 0
        %v565 = vperm.slane %v533, 0
        %v566 = vperm.slane %v534, 0
        %567 = vrot.lane.b32.xlu0 %v563, 120
        %v568 = vpop.permute.xlu0 %567
        %569 = vrot.lane.b32.xlu0 %v564, 120
        %v570 = vpop.permute.xlu0 %569
        %571 = vrot.lane.b32.xlu0 %v565, 120
        %v572 = vpop.permute.xlu0 %571
        %573 = vrot.lane.b32.xlu0 %v566, 120
        %v574 = vpop.permute.xlu0 %573
        %579 = vst.msk [vmem:[#allocation3 + $0x1] sm:$0x1] %vm538, %v568
        %580 = vst.msk [vmem:[#allocation3 + $0x9] sm:$0x1] %vm538, %v570
        %581 = vst.msk [vmem:[#allocation3 + $0x11] sm:$0x1] %vm538, %v572
        %582 = vst.msk [vmem:[#allocation3 + $0x19] sm:$0x1] %vm538, %v574
        %583 = vrot.lane.b32.xlu0 %v543, 64
        %v584 = vpop.permute.xlu0 %583
        %585 = vrot.lane.b32.xlu0 %v544, 64
        %v586 = vpop.permute.xlu0 %585
        %587 = vrot.lane.b32.xlu0 %v545, 64
        %v588 = vpop.permute.xlu0 %587
        %589 = vrot.lane.b32.xlu0 %v546, 64
        %v590 = vpop.permute.xlu0 %589
        %595 = vst.msk [vmem:[#allocation2 + $0x2] sm:$0x1] %vm527, %v584
        %596 = vst.msk [vmem:[#allocation2 + $0xa] sm:$0x1] %vm527, %v586
        %597 = vst.msk [vmem:[#allocation2 + $0x12] sm:$0x1] %vm527, %v588
        %598 = vst.msk [vmem:[#allocation2 + $0x1a] sm:$0x1] %vm527, %v590
        %599 = vrot.lane.b32.xlu0 %v563, 112
        %v600 = vpop.permute.xlu0 %599
        %601 = vrot.lane.b32.xlu0 %v564, 112
        %v602 = vpop.permute.xlu0 %601
        %603 = vrot.lane.b32.xlu0 %v565, 112
        %v604 = vpop.permute.xlu0 %603
        %605 = vrot.lane.b32.xlu0 %v566, 112
        %v606 = vpop.permute.xlu0 %605
        %611 = vst.msk [vmem:[#allocation3 + $0x2] sm:$0x1] %vm538, %v600
        %612 = vst.msk [vmem:[#allocation3 + $0xa] sm:$0x1] %vm538, %v602
        %613 = vst.msk [vmem:[#allocation3 + $0x12] sm:$0x1] %vm538, %v604
        %614 = vst.msk [vmem:[#allocation3 + $0x1a] sm:$0x1] %vm538, %v606
        %615 = vrot.lane.b32.xlu0 %v543, 32
        %v616 = vpop.permute.xlu0 %615
        %617 = vrot.lane.b32.xlu0 %v544, 32
        %v618 = vpop.permute.xlu0 %617
        %619 = vrot.lane.b32.xlu0 %v545, 32
        %v620 = vpop.permute.xlu0 %619
        %621 = vrot.lane.b32.xlu0 %v546, 32
        %v622 = vpop.permute.xlu0 %621
        %627 = vst.msk [vmem:[#allocation2 + $0x3] sm:$0x1] %vm527, %v616
        %628 = vst.msk [vmem:[#allocation2 + $0xb] sm:$0x1] %vm527, %v618
        %629 = vst.msk [vmem:[#allocation2 + $0x13] sm:$0x1] %vm527, %v620
        %630 = vst.msk [vmem:[#allocation2 + $0x1b] sm:$0x1] %vm527, %v622
        %631 = vrot.lane.b32.xlu0 %v563, 104
        %v632 = vpop.permute.xlu0 %631
        %633 = vrot.lane.b32.xlu0 %v564, 104
        %v634 = vpop.permute.xlu0 %633
        %635 = vrot.lane.b32.xlu0 %v565, 104
        %v636 = vpop.permute.xlu0 %635
        %637 = vrot.lane.b32.xlu0 %v566, 104
        %v638 = vpop.permute.xlu0 %637
        %643 = vst.msk [vmem:[#allocation3 + $0x3] sm:$0x1] %vm538, %v632
        %644 = vst.msk [vmem:[#allocation3 + $0xb] sm:$0x1] %vm538, %v634
        %645 = vst.msk [vmem:[#allocation3 + $0x13] sm:$0x1] %vm538, %v636
        %646 = vst.msk [vmem:[#allocation3 + $0x1b] sm:$0x1] %vm538, %v638
        %v648 = vrot.slane %v518, 1
        %v649 = vrot.slane %v518, 2
        %v650 = vrot.slane %v518, 3
        %654 = vst.msk [vmem:[#allocation2 + $0x4] sm:$0x1] %vm527, %v518
        %655 = vst.msk [vmem:[#allocation2 + $0xc] sm:$0x1] %vm527, %v648
        %656 = vst.msk [vmem:[#allocation2 + $0x14] sm:$0x1] %vm527, %v649
        %657 = vst.msk [vmem:[#allocation2 + $0x1c] sm:$0x1] %vm527, %v650
        %658 = vrot.lane.b32.xlu0 %v563, 96
        %v659 = vpop.permute.xlu0 %658
        %660 = vrot.lane.b32.xlu0 %v564, 96
        %v661 = vpop.permute.xlu0 %660
        %662 = vrot.lane.b32.xlu0 %v565, 96
        %v663 = vpop.permute.xlu0 %662
        %664 = vrot.lane.b32.xlu0 %v566, 96
        %v665 = vpop.permute.xlu0 %664
        %670 = vst.msk [vmem:[#allocation3 + $0x4] sm:$0x1] %vm538, %v659
        %671 = vst.msk [vmem:[#allocation3 + $0xc] sm:$0x1] %vm538, %v661
        %672 = vst.msk [vmem:[#allocation3 + $0x14] sm:$0x1] %vm538, %v663
        %673 = vst.msk [vmem:[#allocation3 + $0x1c] sm:$0x1] %vm538, %v665
        %v674 = vperm.slane %v518, 0
        %v675 = vperm.slane %v648, 0
        %v676 = vperm.slane %v649, 0
        %v677 = vperm.slane %v650, 0
        %678 = vrot.lane.b32.xlu0 %v674, 96
        %v679 = vpop.permute.xlu0 %678
        %680 = vrot.lane.b32.xlu0 %v675, 96
        %v681 = vpop.permute.xlu0 %680
        %682 = vrot.lane.b32.xlu0 %v676, 96
        %v683 = vpop.permute.xlu0 %682
        %684 = vrot.lane.b32.xlu0 %v677, 96
        %v685 = vpop.permute.xlu0 %684
        %690 = vst.msk [vmem:[#allocation2 + $0x5] sm:$0x1] %vm527, %v679
        %691 = vst.msk [vmem:[#allocation2 + $0xd] sm:$0x1] %vm527, %v681
        %692 = vst.msk [vmem:[#allocation2 + $0x15] sm:$0x1] %vm527, %v683
        %693 = vst.msk [vmem:[#allocation2 + $0x1d] sm:$0x1] %vm527, %v685
        %694 = vrot.lane.b32.xlu0 %v563, 88
        %v695 = vpop.permute.xlu0 %694
        %696 = vrot.lane.b32.xlu0 %v564, 88
        %v697 = vpop.permute.xlu0 %696
        %698 = vrot.lane.b32.xlu0 %v565, 88
        %v699 = vpop.permute.xlu0 %698
        %700 = vrot.lane.b32.xlu0 %v566, 88
        %v701 = vpop.permute.xlu0 %700
        %706 = vst.msk [vmem:[#allocation3 + $0x5] sm:$0x1] %vm538, %v695
        %707 = vst.msk [vmem:[#allocation3 + $0xd] sm:$0x1] %vm538, %v697
        %708 = vst.msk [vmem:[#allocation3 + $0x15] sm:$0x1] %vm538, %v699
        %709 = vst.msk [vmem:[#allocation3 + $0x1d] sm:$0x1] %vm538, %v701
        %710 = vrot.lane.b32.xlu0 %v674, 64
        %v711 = vpop.permute.xlu0 %710
        %712 = vrot.lane.b32.xlu0 %v675, 64
        %v713 = vpop.permute.xlu0 %712
        %714 = vrot.lane.b32.xlu0 %v676, 64
        %v715 = vpop.permute.xlu0 %714
        %716 = vrot.lane.b32.xlu0 %v677, 64
        %v717 = vpop.permute.xlu0 %716
        %722 = vst.msk [vmem:[#allocation2 + $0x6] sm:$0x1] %vm527, %v711
        %723 = vst.msk [vmem:[#allocation2 + $0xe] sm:$0x1] %vm527, %v713
        %724 = vst.msk [vmem:[#allocation2 + $0x16] sm:$0x1] %vm527, %v715
        %725 = vst.msk [vmem:[#allocation2 + $0x1e] sm:$0x1] %vm527, %v717
        %726 = vrot.lane.b32.xlu0 %v563, 80
        %v727 = vpop.permute.xlu0 %726
        %728 = vrot.lane.b32.xlu0 %v564, 80
        %v729 = vpop.permute.xlu0 %728
        %730 = vrot.lane.b32.xlu0 %v565, 80
        %v731 = vpop.permute.xlu0 %730
        %732 = vrot.lane.b32.xlu0 %v566, 80
        %v733 = vpop.permute.xlu0 %732
        %738 = vst.msk [vmem:[#allocation3 + $0x6] sm:$0x1] %vm538, %v727
        %739 = vst.msk [vmem:[#allocation3 + $0xe] sm:$0x1] %vm538, %v729
        %740 = vst.msk [vmem:[#allocation3 + $0x16] sm:$0x1] %vm538, %v731
        %741 = vst.msk [vmem:[#allocation3 + $0x1e] sm:$0x1] %vm538, %v733
        %742 = vrot.lane.b32.xlu0 %v674, 32
        %v743 = vpop.permute.xlu0 %742
        %744 = vrot.lane.b32.xlu0 %v675, 32
        %v745 = vpop.permute.xlu0 %744
        %746 = vrot.lane.b32.xlu0 %v676, 32
        %v747 = vpop.permute.xlu0 %746
        %748 = vrot.lane.b32.xlu0 %v677, 32
        %v749 = vpop.permute.xlu0 %748
        %754 = vst.msk [vmem:[#allocation2 + $0x7] sm:$0x1] %vm527, %v743
        %755 = vst.msk [vmem:[#allocation2 + $0xf] sm:$0x1] %vm527, %v745
        %756 = vst.msk [vmem:[#allocation2 + $0x17] sm:$0x1] %vm527, %v747
        %757 = vst.msk [vmem:[#allocation2 + $0x1f] sm:$0x1] %vm527, %v749
        %758 = vrot.lane.b32.xlu0 %v563, 72
        %v759 = vpop.permute.xlu0 %758
        %760 = vrot.lane.b32.xlu0 %v564, 72
        %v761 = vpop.permute.xlu0 %760
        %762 = vrot.lane.b32.xlu0 %v565, 72
        %v763 = vpop.permute.xlu0 %762
        %764 = vrot.lane.b32.xlu0 %v566, 72
        %v765 = vpop.permute.xlu0 %764
        %770 = vst.msk [vmem:[#allocation3 + $0x7] sm:$0x1] %vm538, %v759
        %771 = vst.msk [vmem:[#allocation3 + $0xf] sm:$0x1] %vm538, %v761
        %772 = vst.msk [vmem:[#allocation3 + $0x17] sm:$0x1] %vm538, %v763
        %773 = vst.msk [vmem:[#allocation3 + $0x1f] sm:$0x1] %vm538, %v765
        %v774 = vld [vmem:[#allocation2] sm:$0xff]
        %v775 = vld [vmem:[#allocation2 + $0x8] sm:$0xff]
        %v776 = vld [vmem:[#allocation2 + $0x10] sm:$0xff]
        %v777 = vld [vmem:[#allocation2 + $0x18] sm:$0xff]
        %v778 = vld [vmem:[#allocation3] sm:$0xff]
        %v779 = vld [vmem:[#allocation3 + $0x8] sm:$0xff]
        %v780 = vld [vmem:[#allocation3 + $0x10] sm:$0xff]
        %v781 = vld [vmem:[#allocation3 + $0x18] sm:$0xff]
        %v783 = vsel %vm423, %v448, 0
        %v786 = vsel %vm423, %v774, 0
        %v789 = vsel %vm423, %v775, 0
        %791 = vmatpush.xpose.msra.mxu0 0.0
        %792 = vmatpush.xpose.msra.mxu0 0.0
        %793 = vmatpush.xpose.msra.mxu0 0.0
        %794 = vmatpush.xpose.msra.mxu0 0.0
        %795 = vmatpush.xpose.msra.mxu0 0.0
        %796 = vmatpush.xpose.msra.mxu0 0.0
        %797 = vmatpush.xpose.msra.mxu0 0.0
        %798 = vmatpush.xpose.msra.mxu0 0.0
        %799 = vmatpush.xpose.msra.mxu0 0.0
        %800 = vmatpush.xpose.msra.mxu0 0.0
        %801 = vmatpush.xpose.msra.mxu0 0.0
        %802 = vmatpush.xpose.msra.mxu0 0.0
        %803 = vmatpush.xpose.msra.mxu0 0.0
        %804 = vmatpush.xpose.msra.mxu0 0.0
        %805 = vmatpush.xpose.msra.mxu0 %v789
        %806 = vmatpush.xpose.msra.mxu0 %v786
        %807 = vmatmul.f32.gmra.mxu0 %v783
        %v808 = vpop.f32.mrf.mxu0
        %v809 = vadd.f32 0.0, %v808
        %810 = vdwg.mxu0
        %v812 = vsel %vm423, %v451, 0
        %v815 = vsel %vm423, %v776, 0
        %v818 = vsel %vm423, %v777, 0
        %820 = vmatpush.xpose.msra.mxu0 0.0
        %821 = vmatpush.xpose.msra.mxu0 0.0
        %822 = vmatpush.xpose.msra.mxu0 0.0
        %823 = vmatpush.xpose.msra.mxu0 0.0
        %824 = vmatpush.xpose.msra.mxu0 0.0
        %825 = vmatpush.xpose.msra.mxu0 0.0
        %826 = vmatpush.xpose.msra.mxu0 0.0
        %827 = vmatpush.xpose.msra.mxu0 0.0
        %828 = vmatpush.xpose.msra.mxu0 0.0
        %829 = vmatpush.xpose.msra.mxu0 0.0
        %830 = vmatpush.xpose.msra.mxu0 0.0
        %831 = vmatpush.xpose.msra.mxu0 0.0
        %832 = vmatpush.xpose.msra.mxu0 0.0
        %833 = vmatpush.xpose.msra.mxu0 0.0
        %834 = vmatpush.xpose.msra.mxu0 %v818
        %835 = vmatpush.xpose.msra.mxu0 %v815
        %836 = vmatmul.f32.gmra.mxu0 %v812
        %v837 = vpop.f32.mrf.mxu0
        %v838 = vadd.f32 0.0, %v837
        %839 = vdwg.mxu0
        %v840 = vmul.f32 %v809, 0.17677669
        %v841 = vmul.f32 %v838, 0.17677669
        %vm842 = vcmask 130048
        %v843 = vsel %vm842, %v840, -inf
        %844 = vmax.xlane.f32.xlu0 %v843
        %v845 = vpop.xlane.xlu0 %844
        %v846 = vsel %vm842, %v841, -inf
        %847 = vmax.xlane.f32.xlu0 %v846
        %v848 = vpop.xlane.xlu0 %847
        %v849 = vsub.f32 %v840, %v845
        %v850 = vsub.f32 %v841, %v848
        %v851 = vmul.f32 %v849, 1.442695
        %v852 = vpow.pop %v851
        %v853 = vmul.f32 %v850, 1.442695
        %v854 = vpow.pop %v853
        %v855 = vsel %vm842, %v852, 0.0
        %856 = vadd.xlane.f32.xlu0 %v855
        %v857 = vpop.xlane.xlu0 %856
        %v858 = vsel %vm842, %v854, 0.0
        %859 = vadd.xlane.f32.xlu0 %v858
        %v860 = vpop.xlane.xlu0 %859
        %v861 = vrcp.pop %v857
        %v862 = vmul.f32 %v857, %v861
        %v863 = vsub.f32 1.0, %v862
        %v864 = vmul.f32 %v861, %v863
        %v865 = vadd.f32 %v861, %v864
        %vm866 = vweird.f32 %v857
        %vm867 = vweird.f32 %v861
        %vm868 = vmor %vm866, %vm867
        %v869 = vsel %vm868, %v861, %v865
        %v870 = vand.u32 2147483647, %v857
        %vm871 = vcmp.eq.f32.partialorder %v870, 8.507059e+37
        %v872 = vand.u32 %v857, 2147483648
        %v873 = vor.u32 1.1754944e-38, %v872
        %v874 = vsel %vm871, %v873, %v869
        %v875 = vrcp.pop %v860
        %v876 = vmul.f32 %v860, %v875
        %v877 = vsub.f32 1.0, %v876
        %v878 = vmul.f32 %v875, %v877
        %v879 = vadd.f32 %v875, %v878
        %vm880 = vweird.f32 %v860
        %vm881 = vweird.f32 %v875
        %vm882 = vmor %vm880, %vm881
        %v883 = vsel %vm882, %v875, %v879
        %v884 = vand.u32 2147483647, %v860
        %vm885 = vcmp.eq.f32.partialorder %v884, 8.507059e+37
        %v886 = vand.u32 %v860, 2147483648
        %v887 = vor.u32 1.1754944e-38, %v886
        %v888 = vsel %vm885, %v887, %v883
        %v889 = vmul.f32 %v852, %v874
        %v890 = vmul.f32 %v854, %v888
        %v891 = vmul.f32 %v889, 1.442695
        %v892 = vpow.pop %v891
        %v893 = vmul.f32 %v890, 1.442695
        %v894 = vpow.pop %v893
        %897 = vrot.lane.b32.xlu0 %v892, 120
        %v898 = vpop.permute.xlu0 %897
        %899 = vrot.lane.b32.xlu0 %v894, 120
        %v900 = vpop.permute.xlu0 %899
        %v903 = vadd.f32 %v892, %v898
        %v904 = vadd.f32 %v894, %v900
        %v905 = vrcp.pop %v903
        %v906 = vmul.f32 %v903, %v905
        %v907 = vsub.f32 1.0, %v906
        %v908 = vmul.f32 %v905, %v907
        %v909 = vadd.f32 %v905, %v908
        %vm910 = vweird.f32 %v903
        %vm911 = vweird.f32 %v905
        %vm912 = vmor %vm910, %vm911
        %v913 = vsel %vm912, %v905, %v909
        %v914 = vand.u32 2147483647, %v903
        %vm915 = vcmp.eq.f32.partialorder %v914, 8.507059e+37
        %v916 = vand.u32 %v903, 2147483648
        %v917 = vor.u32 1.1754944e-38, %v916
        %v918 = vsel %vm915, %v917, %v913
        %v919 = vrcp.pop %v904
        %v920 = vmul.f32 %v904, %v919
        %v921 = vsub.f32 1.0, %v920
        %v922 = vmul.f32 %v919, %v921
        %v923 = vadd.f32 %v919, %v922
        %vm924 = vweird.f32 %v904
        %vm925 = vweird.f32 %v919
        %vm926 = vmor %vm924, %vm925
        %v927 = vsel %vm926, %v919, %v923
        %v928 = vand.u32 2147483647, %v904
        %vm929 = vcmp.eq.f32.partialorder %v928, 8.507059e+37
        %v930 = vand.u32 %v904, 2147483648
        %v931 = vor.u32 1.1754944e-38, %v930
        %v932 = vsel %vm929, %v931, %v927
        %v933 = vmul.f32 %v778, %v892
        %v934 = vmul.f32 %v780, %v894
        %v935 = vmul.f32 %v779, %v898
        %v936 = vmul.f32 %v781, %v900
        %v937 = vadd.f32 %v933, %v935
        %v938 = vadd.f32 %v934, %v936
        %v939 = vmul.f32 %v937, %v918
        %v940 = vmul.f32 %v938, %v932
        %v941 = vld [vmem:[%s348] sm:$0xff]
        %v942 = vld [vmem:[%s348 + $0x8] sm:$0xff]
        %vm943 = vcmask 64512
        %v945 = vsel %vm943, %v939, 0
        %947 = vmatpush.msra.mxu0 0.0
        %948 = vmatpush.msra.mxu0 0.0
        %949 = vmatpush.msra.mxu0 0.0
        %950 = vmatpush.msra.mxu0 0.0
        %951 = vmatpush.msra.mxu0 0.0
        %952 = vmatpush.msra.mxu0 0.0
        %953 = vmatpush.msra.mxu0 0.0
        %954 = vmatpush.msra.mxu0 0.0
        %955 = vmatpush.msra.mxu0 0.0
        %956 = vmatpush.msra.mxu0 0.0
        %957 = vmatpush.msra.mxu0 0.0
        %958 = vmatpush.msra.mxu0 0.0
        %959 = vmatpush.msra.mxu0 0.0
        %960 = vmatpush.msra.mxu0 0.0
        %961 = vmatpush.msra.mxu0 0.0
        %962 = vmatpush.msra.mxu0 %v941
        %963 = vmatmul.f32.gmra.mxu0 %v945
        %v964 = vpop.f32.mrf.mxu0
        %v965 = vadd.f32 0.0, %v964
        %966 = vdwg.mxu0
        %v968 = vsel %vm943, %v940, 0
        %970 = vmatpush.msra.mxu0 0.0
        %971 = vmatpush.msra.mxu0 0.0
        %972 = vmatpush.msra.mxu0 0.0
        %973 = vmatpush.msra.mxu0 0.0
        %974 = vmatpush.msra.mxu0 0.0
        %975 = vmatpush.msra.mxu0 0.0
        %976 = vmatpush.msra.mxu0 0.0
        %977 = vmatpush.msra.mxu0 0.0
        %978 = vmatpush.msra.mxu0 0.0
        %979 = vmatpush.msra.mxu0 0.0
        %980 = vmatpush.msra.mxu0 0.0
        %981 = vmatpush.msra.mxu0 0.0
        %982 = vmatpush.msra.mxu0 0.0
        %983 = vmatpush.msra.mxu0 0.0
        %984 = vmatpush.msra.mxu0 0.0
        %985 = vmatpush.msra.mxu0 %v942
        %986 = vmatmul.f32.gmra.mxu0 %v968
        %v987 = vpop.f32.mrf.mxu0
        %v988 = vadd.f32 0.0, %v987
        %989 = vdwg.mxu0
        %990 = vst.msk [vmem:[%s409] sm:$0xff] %vm423, %v965
        %991 = vst.msk [vmem:[%s409 + $0x8] sm:$0xff] %vm423, %v988
        %s992 = sand.u32 %s198, 1
        %s993 = scalar_lea.sflag [#allocation6], %s992
        %s994 = sand.u32 %s198, 1
        %s995 = smul.addr %s994, 16
        %s996 = scalar_lea.vmem [#allocation13], %s995
        // Predicated region
        $region69: #{tpu_custom_call.1} parent=47 // pred_check
          %p997 = pneg %p208
        $region70: #{tpu_custom_call.1} parent=47 // pred_check_branch
          %999 = sbr.rel (%p997) target = $region72
        $region71: #{tpu_custom_call.1} parent=47 // pred_region
          %s1000 = smul.u32 2, %s28
          %1002 = vsyncadd %s993, 0
          %s1003 = smul.addr %s1000, 8
          %s1004 = scalar_lea.hbm %s7, %s1003
          %s1005 = sshll.u32 %s996, 4
          %s1006 = int_to_ptr.vmem [resolvable:$true] %s1005
          %s1007 = sshll.u32 %s1004, 4
          %s1008 = int_to_ptr.hbm [resolvable:$true] %s1007
          %1013 = dma.vmem_to_hbm [thread:$0]  %s1006, 256, %s1008, %s993, 128, 128, 8
        $region72: #{tpu_custom_call.1} parent=47 // pred_fallthru
          _
      $region48: #{tpu_custom_call.1} parent=5 // pred_fallthru
        _
      %p1014 = scmp.le.s32.totalorder 2, %s23
      // Predicated region
      $region73: #{tpu_custom_call.1} parent=5 // pred_check
        %p1015 = pneg %p1014
      $region74: #{tpu_custom_call.1} parent=5 // pred_check_branch
        %1017 = sbr.rel (%p1015) target = $region76
      $region75: #{tpu_custom_call.1} parent=5 // pred_region
        %s1018 = ssub.s32 %s23, 2
        // Predicated region
        $region77: #{tpu_custom_call.1} parent=75 // pred_check
          %p1019 = pneg %p214
        $region78: #{tpu_custom_call.1} parent=75 // pred_check_branch
          %1021 = sbr.rel (%p1019) target = $region80
        $region79: #{tpu_custom_call.1} parent=75 // pred_region
          %s1022 = sand.u32 %s199, 1
          %s1023 = scalar_lea.sflag [#allocation6], %s1022
          %s1024 = sand.u32 %s199, 1
          %s1025 = smul.addr %s1024, 16
          %s1026 = scalar_lea.vmem [#allocation13], %s1025
          %1028 = dma.done %s1023, 256
        $region80: #{tpu_custom_call.1} parent=75 // pred_fallthru
          _
      $region76: #{tpu_custom_call.1} parent=5 // pred_fallthru
        _
    $region6: #{tpu_custom_call.1} parent=1 // loop_footer
      %s27 = sadd.s32 1, %s23
    $region7: #{tpu_custom_call.1} parent=1 // loop_footer_branch
      %22 = sbr.rel target = $region3
    $region8: #{tpu_custom_call.1} parent=1 // loop_exit
      _
    %1029 = vsyncpa [#allocation5], 1
    %s1030 = scalar_lea.sflag [#allocation5], 1
    %1031 = vsyncpa %s1030, 1
    %1032 = vsyncpa [#allocation8], 1
    %s1033 = scalar_lea.sflag [#allocation8], 1
    %1034 = vsyncpa %s1033, 1
    %1035 = vsyncpa [#allocation11], 1
    %1036 = vsyncpa [#allocation6], 1
    %s1037 = scalar_lea.sflag [#allocation6], 1
    %1038 = vsyncpa %s1037, 1

</llo_original>
